<compile_context>
chip_gen: v7x
topology: tpu7x:2x2x1
jax: 0.10.0
libtpu: 0.0.40
codegen_flags: <defaults>
</compile_context>

<pallas_src>
import functools

import jax
import jax.numpy as jnp
from jax.experimental import pallas as pl
from jax.experimental.pallas import tpu as pltpu

LANES = 128
SUBLANES = 8


def _chip_defaults():
    """Per-generation tiling defaults: (row_block, num_shards)."""
    kind = ""
    try:
        kind = jax.devices()[0].device_kind.lower()
    except Exception:
        pass
    # 8192x128 f32 tile = 4 MiB -> 16 MiB for 2 inputs x 2 pipeline buffers,
    # inside the 32 MiB scoped-VMEM default on v6e/v7x.  v5e (16 MiB default)
    # and unknown/older chips get 4096 (-> 8 MiB).
    row_block = 8192 if ("v6" in kind or "v7" in kind) else 4096
    # The leading "parallel" shard axis only pays off on 2-TensorCore chips
    # (v7x); on 1-TC chips it is just a serial loop that can force ghost-tile
    # re-reads + masking, so keep it at 1 there.
    num_shards = 2 if "v7" in kind else 1
    return row_block, num_shards


def _iou_reduce_kernel(x_ref, t_ref, inter_ref, total_ref, *,
                       rows, row_block, need_mask):
    """Accumulate (8,128) partials of sum(p*t) and sum(p+t) for one shard."""
    step = pl.program_id(1)

    @pl.when(step == 0)
    def _():
        inter_ref[...] = jnp.zeros_like(inter_ref)
        total_ref[...] = jnp.zeros_like(total_ref)

    # Cast in-kernel: narrower HBM dtypes (bf16 logits / bf16 or int8 masks)
    # halve/quarter the byte stream (this kernel is purely HBM-bound); math
    # stays f32.
    x = x_ref[...].astype(jnp.float32)
    t = t_ref[...].astype(jnp.float32)
    # EUP-friendly sigmoid: one tanh push + two cheap VALU ops.
    p = 0.5 * jnp.tanh(0.5 * x) + 0.5

    k = row_block // SUBLANES

    def accumulate(p_, t_):
        # Sum over the leading axis = pure vreg-to-vreg VPU adds (no XLU).
        inter_ref[...] += (p_ * t_).reshape(k, SUBLANES, LANES).sum(axis=0)
        total_ref[...] += (p_ + t_).reshape(k, SUBLANES, LANES).sum(axis=0)

    if not need_mask:
        accumulate(p, t)
    else:
        # Global (unclamped) tile index.  Only partial / ghost tiles take the
        # masked (iota + 2x select) path; full tiles stay on the cheap path so
        # the kernel cannot flip from HBM-bound to VALU-slot-bound.
        tile = pl.program_id(0) * pl.num_programs(1) + step
        is_full = (tile + 1) * row_block <= rows

        @pl.when(is_full)
        def _():
            accumulate(p, t)

        @pl.when(jnp.logical_not(is_full))
        def _():
            row_ids = tile * row_block + jax.lax.broadcasted_iota(
                jnp.int32, (row_block, LANES), 0)
            valid = row_ids < rows
            # NOTE: mask BEFORE the arithmetic so OOB / ghost-tile garbage
            # (even NaNs) never propagates into the accumulators.
            accumulate(jnp.where(valid, p, 0.0), jnp.where(valid, t, 0.0))


def _reduce_sums(x2, t2, row_block_hint, num_shards_hint):
    """sum(sigmoid(x)*t), sum(sigmoid(x)+t) over a (rows, 128) slab (rows % 8 == 0)."""
    rows = x2.shape[0]
    row_block = min(row_block_hint, rows)
    row_tiles = pl.cdiv(rows, row_block)
    num_shards = min(num_shards_hint, row_tiles)
    inner = pl.cdiv(row_tiles, num_shards)
    has_ghost = num_shards * inner != row_tiles
    need_mask = (row_tiles * row_block != rows) or has_ghost

    if has_ghost:
        # Fully-out-of-range tiles (ragged shard split) re-read the last valid
        # tile; the in-kernel mask zeroes their contribution.
        def in_map(c, i):
            return (jnp.minimum(c * inner + i, row_tiles - 1), 0)
    else:
        # Common case: no clamp in the index map at all.
        def in_map(c, i):
            return (c * inner + i, 0)

    kernel = functools.partial(_iou_reduce_kernel, rows=rows,
                               row_block=row_block, need_mask=need_mask)

    # 2 inputs x 2 pipeline buffers of (row_block, 128) f32, plus headroom.
    vmem_limit = 4 * row_block * LANES * 4 + (4 << 20)

    inter, total = pl.pallas_call(
        kernel,
        out_shape=(
            jax.ShapeDtypeStruct((num_shards * SUBLANES, LANES), jnp.float32),
            jax.ShapeDtypeStruct((num_shards * SUBLANES, LANES), jnp.float32),
        ),
        grid_spec=pltpu.PrefetchScalarGridSpec(
            num_scalar_prefetch=0,
            grid=(num_shards, inner),
            in_specs=[
                pl.BlockSpec((row_block, LANES), in_map),
                pl.BlockSpec((row_block, LANES), in_map),
            ],
            out_specs=[
                pl.BlockSpec((SUBLANES, LANES), lambda c, i: (c, 0)),
                pl.BlockSpec((SUBLANES, LANES), lambda c, i: (c, 0)),
            ],
        ),
        compiler_params=pltpu.CompilerParams(
            dimension_semantics=("parallel", "arbitrary"),
            vmem_limit_bytes=vmem_limit),
    )(x2, t2)
    # Final tiny cross-lane/shard reduction done once, in plain JAX.
    return jnp.sum(inter), jnp.sum(total)


@functools.partial(jax.jit,
                   static_argnames=("smooth", "_row_block", "_num_shards"))
def iou_loss(inputs, targets, smooth=1, _row_block=None, _num_shards=None):
    """Pallas equivalent of IOULoss.forward (inputs are raw logits)."""
    row_block_hint, num_shards_hint = _chip_defaults()
    if _row_block is not None:
        row_block_hint = _row_block
    if _num_shards is not None:
        num_shards_hint = _num_shards

    x = inputs.reshape(-1)
    t = targets.reshape(-1)
    n = x.shape[0]
    block_elems = SUBLANES * LANES
    n_main = (n // block_elems) * block_elems   # multiple of 8*128

    inter = jnp.float32(0.0)
    total = jnp.float32(0.0)

    if n_main > 0:
        rows = n_main // LANES
        x2 = (x if n_main == n else x[:n_main]).reshape(rows, LANES)
        t2 = (t if n_main == n else t[:n_main]).reshape(rows, LANES)
        inter_m, total_m = _reduce_sums(x2, t2, row_block_hint, num_shards_hint)
        inter = inter + inter_m
        total = total + total_m

    if n_main < n:
        # Ragged tail (< 1024 elements): negligible, plain-JAX epilogue.
        xt = x[n_main:].astype(jnp.float32)
        tt = t[n_main:].astype(jnp.float32)
        pt = jax.nn.sigmoid(xt)
        inter = inter + jnp.sum(pt * tt)
        total = total + jnp.sum(pt + tt)

    union = total - inter
    iou = (inter + smooth) / (union + smooth)
    return 1.0 - iou


def _reference(inputs, targets, smooth=1):
    p = jax.nn.sigmoid(inputs.astype(jnp.float32)).reshape(-1)
    t = targets.astype(jnp.float32).reshape(-1)
    inter = jnp.sum(p * t)
    total = jnp.sum(p + t)
    union = total - inter
    return 1.0 - (inter + smooth) / (union + smooth)


if __name__ == "__main__":
    key = jax.random.PRNGKey(0)
    k1, k2, k3, k4 = jax.random.split(key, 4)

    # Primary case: NCHW logits + binary targets, matching the PyTorch module.
    x = jax.random.normal(k1, (2, 4, 16, 16), dtype=jnp.float32)
    y = (jax.random.uniform(k2, (2, 4, 16, 16)) > 0.5).astype(jnp.float32)
    loss = iou_loss(x, y, smooth=1)
    jax.block_until_ready(loss)
    ref = _reference(x, y, smooth=1)
    assert jnp.allclose(loss, ref, atol=1e-5, rtol=1e-5), (loss, ref)

    # Secondary case: non-multiple-of-1024 total -> ragged tail epilogue,
    # default (single-tile) grid path.
    x2 = jax.random.normal(k3, (2, 3, 160, 219), dtype=jnp.float32)
    y2 = (jax.random.uniform(k4, (2, 3, 160, 219)) > 0.5).astype(jnp.float32)
    loss2 = iou_loss(x2, y2, smooth=1)
    jax.block_until_ready(loss2)
    ref2 = _reference(x2, y2, smooth=1)
    assert jnp.allclose(loss2, ref2, atol=1e-4, rtol=1e-4), (loss2, ref2)

    # Stress case: force a small row_block + 2 shards on the same data to
    # exercise the multi-tile grid, the gated partial-tile mask path and the
    # clamped ghost-tile path, regardless of the chip this runs on.
    loss3 = iou_loss(x2, y2, smooth=1, _row_block=256, _num_shards=2)
    jax.block_until_ready(loss3)
    assert jnp.allclose(loss3, ref2, atol=1e-4, rtol=1e-4), (loss3, ref2)

    print("KERNEL_OK")
</pallas_src>

<mosaic_0001>
module attributes {stable_mosaic.version = 11 : i64} {
  func.func @_iou_reduce_kernel(%arg0: i32, %arg1: i32, %arg2: memref<16x128xf32, #tpu.memory_space<vmem>>, %arg3: memref<16x128xf32, #tpu.memory_space<vmem>>, %arg4: memref<8x128xf32, #tpu.memory_space<vmem>>, %arg5: memref<8x128xf32, #tpu.memory_space<vmem>>) attributes {dimension_semantics = [#tpu.dimension_semantics<parallel>, #tpu.dimension_semantics<arbitrary>], iteration_bounds = array<i64: 1, 1>, scalar_prefetch = 0 : i64, scratch_operands = 0 : i64, tpu.core_type = #tpu.core_type<tc>, window_params = [{transform_indices = @transform_0, window_bounds = array<i64: 16, 128>}, {transform_indices = @transform_1, window_bounds = array<i64: 16, 128>}, {transform_indices = @transform_2, window_bounds = array<i64: 8, 128>}, {transform_indices = @transform_3, window_bounds = array<i64: 8, 128>}]} {
    %c0_i32 = arith.constant 0 : i32
    %0 = arith.cmpi eq, %arg1, %c0_i32 : i32
    %1 = arith.extui %0 : i1 to i32
    %c0_i32_0 = arith.constant 0 : i32
    %2 = arith.cmpi ne, %1, %c0_i32_0 : i32
    scf.if %2 {
      %cst_16 = arith.constant 0.000000e+00 : f32
      %24 = vector.broadcast %cst_16 : f32 to vector<8x128xf32>
      %c0_17 = arith.constant 0 : index
      %c0_18 = arith.constant 0 : index
      %25 = vector.load %arg4[%c0_17, %c0_18] : memref<8x128xf32, #tpu.memory_space<vmem>>, vector<8x128xf32>
      tpu.vector_store %arg4[%c0_17, %c0_18], %24 {strides = array<i32>} : memref<8x128xf32, #tpu.memory_space<vmem>>, vector<8x128xf32>,
      %cst_19 = arith.constant 0.000000e+00 : f32
      %26 = vector.broadcast %cst_19 : f32 to vector<8x128xf32>
      %c0_20 = arith.constant 0 : index
      %c0_21 = arith.constant 0 : index
      %27 = vector.load %arg5[%c0_20, %c0_21] : memref<8x128xf32, #tpu.memory_space<vmem>>, vector<8x128xf32>
      tpu.vector_store %arg5[%c0_20, %c0_21], %26 {strides = array<i32>} : memref<8x128xf32, #tpu.memory_space<vmem>>, vector<8x128xf32>,
    } else {
    }
    %c0 = arith.constant 0 : index
    %c0_1 = arith.constant 0 : index
    %3 = vector.load %arg2[%c0, %c0_1] : memref<16x128xf32, #tpu.memory_space<vmem>>, vector<16x128xf32>
    %c0_2 = arith.constant 0 : index
    %c0_3 = arith.constant 0 : index
    %4 = vector.load %arg3[%c0_2, %c0_3] : memref<16x128xf32, #tpu.memory_space<vmem>>, vector<16x128xf32>
    %cst = arith.constant 5.000000e-01 : f32
    %5 = vector.broadcast %cst : f32 to vector<16x128xf32>
    %6 = arith.mulf %5, %3 : vector<16x128xf32>
    %7 = math.tanh %6 : vector<16x128xf32>
    %cst_4 = arith.constant 5.000000e-01 : f32
    %8 = vector.broadcast %cst_4 : f32 to vector<16x128xf32>
    %9 = arith.mulf %8, %7 : vector<16x128xf32>
    %cst_5 = arith.constant 5.000000e-01 : f32
    %10 = vector.broadcast %cst_5 : f32 to vector<16x128xf32>
    %11 = arith.addf %9, %10 : vector<16x128xf32>
    %c0_6 = arith.constant 0 : index
    %c0_7 = arith.constant 0 : index
    %12 = vector.load %arg4[%c0_6, %c0_7] : memref<8x128xf32, #tpu.memory_space<vmem>>, vector<8x128xf32>
    %13 = arith.mulf %11, %4 : vector<16x128xf32>
    %14 = vector.shape_cast %13 : vector<16x128xf32> to vector<2x8x128xf32>
    %cst_8 = arith.constant dense<0.000000e+00> : vector<8x128xf32>
    %15 = vector.multi_reduction <add>, %14, %cst_8 [0] : vector<2x8x128xf32> to vector<8x128xf32>
    %16 = arith.addf %12, %15 : vector<8x128xf32>
    %c0_9 = arith.constant 0 : index
    %c0_10 = arith.constant 0 : index
    %17 = vector.load %arg4[%c0_9, %c0_10] : memref<8x128xf32, #tpu.memory_space<vmem>>, vector<8x128xf32>
    tpu.vector_store %arg4[%c0_9, %c0_10], %16 {strides = array<i32>} : memref<8x128xf32, #tpu.memory_space<vmem>>, vector<8x128xf32>,
    %c0_11 = arith.constant 0 : index
    %c0_12 = arith.constant 0 : index
    %18 = vector.load %arg5[%c0_11, %c0_12] : memref<8x128xf32, #tpu.memory_space<vmem>>, vector<8x128xf32>
    %19 = arith.addf %11, %4 : vector<16x128xf32>
    %20 = vector.shape_cast %19 : vector<16x128xf32> to vector<2x8x128xf32>
    %cst_13 = arith.constant dense<0.000000e+00> : vector<8x128xf32>
    %21 = vector.multi_reduction <add>, %20, %cst_13 [0] : vector<2x8x128xf32> to vector<8x128xf32>
    %22 = arith.addf %18, %21 : vector<8x128xf32>
    %c0_14 = arith.constant 0 : index
    %c0_15 = arith.constant 0 : index
    %23 = vector.load %arg5[%c0_14, %c0_15] : memref<8x128xf32, #tpu.memory_space<vmem>>, vector<8x128xf32>
    tpu.vector_store %arg5[%c0_14, %c0_15], %22 {strides = array<i32>} : memref<8x128xf32, #tpu.memory_space<vmem>>, vector<8x128xf32>,
    return
  }
  func.func @transform_0(%arg0: i32, %arg1: i32) -> (i32, i32) {
    %c1_i32 = arith.constant 1 : i32
    %0 = arith.muli %arg0, %c1_i32 : i32
    %1 = arith.addi %0, %arg1 : i32
    %c0_i32 = arith.constant 0 : i32
    %c0_i32_0 = arith.constant 0 : i32
    return %1, %c0_i32 : i32, i32
  }
  func.func @transform_1(%arg0: i32, %arg1: i32) -> (i32, i32) {
    %c1_i32 = arith.constant 1 : i32
    %0 = arith.muli %arg0, %c1_i32 : i32
    %1 = arith.addi %0, %arg1 : i32
    %c0_i32 = arith.constant 0 : i32
    %c0_i32_0 = arith.constant 0 : i32
    return %1, %c0_i32 : i32, i32
  }
  func.func @transform_2(%arg0: i32, %arg1: i32) -> (i32, i32) {
    %c0_i32 = arith.constant 0 : i32
    %c0_i32_0 = arith.constant 0 : i32
    return %arg0, %c0_i32 : i32, i32
  }
  func.func @transform_3(%arg0: i32, %arg1: i32) -> (i32, i32) {
    %c0_i32 = arith.constant 0 : i32
    %c0_i32_0 = arith.constant 0 : i32
    return %arg0, %c0_i32 : i32, i32
  }
}

</mosaic_0001>

<llo_original>
// kernel: iou_loss.1
$region0: #{iou_loss.1}
  #allocation0 [shape = 'u32[]', space=smem, size = 0x4, offset = 0x4, fixed_abs, tag = 'smem constant byte address 0x4 - core index']
  #allocation1 [shape = 'u32[144,128]{1,0:T(1,128)}', space=vmem, size = 0x12000, scoped, tag = 'internal scratch']
  %s0 = inlined_call_operand.vmem [shape: f32[16,128], index: 0, kind: input, shape index: {}]
  %s1 = inlined_call_operand.vmem [shape: f32[16,128], index: 1, kind: input, shape index: {}]
  %s2 = inlined_call_operand.vmem [shape: f32[8,128], index: 2, kind: output, shape index: {0}]
  %s3 = inlined_call_operand.vmem [shape: f32[8,128], index: 3, kind: output, shape index: {1}]
  %4 = xla_tuple %s2, %s3
  %s5 = sld [smem:[#allocation0]]
  $region30: #{iou_loss.1} parent=0
    _
  %s7 = ssub.s32 1, %s5
  %s8 = scalar_select 0, %s7, %s5
  // Predicated region
  $region2: #{iou_loss.1} parent=0 // pred_check
    _
  $region3: #{iou_loss.1} parent=0 // pred_check_branch
    %10 = sbr.rel (0) target = $region5
  $region4: #{iou_loss.1} parent=0 // pred_region
    %s11 = sadd.s32 0, 0
    %s12 = smul.u32 2, %s11
    %p13 = scmp.lt.s32.totalorder %s12, 1
    %s14 = scalar_select %p13, %s12, 1
    %s15 = smul.addr %s14, 8
    %s16 = scalar_lea.vmem %s0, %s15
    %s17 = sadd.s32 0, 0
    %s18 = smul.u32 2, %s17
  $region5: #{iou_loss.1} parent=0 // pred_fallthru
    _
  // Predicated region
  $region6: #{iou_loss.1} parent=0 // pred_check
    _
  $region7: #{iou_loss.1} parent=0 // pred_check_branch
    %20 = sbr.rel (0) target = $region9
  $region8: #{iou_loss.1} parent=0 // pred_region
    %s21 = sadd.s32 0, 0
    %s22 = smul.u32 2, %s21
    %p23 = scmp.lt.s32.totalorder %s22, 1
    %s24 = scalar_select %p23, %s22, 1
    %s25 = smul.addr %s24, 8
    %s26 = scalar_lea.vmem %s1, %s25
    %s27 = sadd.s32 0, 0
    %s28 = smul.u32 2, %s27
  $region9: #{iou_loss.1} parent=0 // pred_fallthru
    _
  %s29 = sadd.s32 0, 0
  %s30 = smul.u32 2, %s29
  %p31 = scmp.lt.s32.totalorder %s30, 1
  %s32 = scalar_select %p31, %s30, 1
  %s33 = smul.addr %s32, 8
  %s34 = scalar_lea.vmem %s0, %s33
  %s35 = sadd.s32 0, 0
  %s36 = smul.u32 2, %s35
  %p37 = scmp.lt.s32.totalorder %s36, 1
  %s38 = scalar_select %p37, %s36, 1
  %s39 = smul.addr %s38, 8
  %s40 = scalar_lea.vmem %s1, %s39
  %s41 = sadd.s32 0, 0
  %s42 = smul.u32 2, %s41
  %p43 = scmp.lt.s32.totalorder %s42, 1
  %s44 = scalar_select %p43, %s42, 1
  %s45 = smul.addr %s44, 8
  %s46 = scalar_lea.vmem %s0, %s45
  %s47 = sadd.s32 0, 0
  %s48 = smul.u32 2, %s47
  %s49 = sadd.s32 0, 0
  %s50 = smul.u32 2, %s49
  %p51 = scmp.lt.s32.totalorder %s50, 1
  %s52 = scalar_select %p51, %s50, 1
  %s53 = smul.addr %s52, 8
  %s54 = scalar_lea.vmem %s1, %s53
  %s55 = sadd.s32 0, 0
  %s56 = smul.u32 2, %s55
  %p57 = scmp.eq.s32.totalorder 0, 0
  // Predicated region
  $region10: #{iou_loss.1} parent=0 // pred_check
    %p58 = pneg %p57
  $region11: #{iou_loss.1} parent=0 // pred_check_branch
    %60 = sbr.rel (%p58) target = $region13
  $region12: #{iou_loss.1} parent=0 // pred_region
    %61 = vst [vmem:[%s2] sm:$0xff] 0.0
    %62 = vst [vmem:[%s3] sm:$0xff] 0.0
  $region13: #{iou_loss.1} parent=0 // pred_fallthru
    _
  %v63 = vld [vmem:[%s46] sm:$0xff]
  %v64 = vld [vmem:[%s46 + $0x8] sm:$0xff]
  %v65 = vld [vmem:[%s54] sm:$0xff]
  %v66 = vld [vmem:[%s54 + $0x8] sm:$0xff]
  %v67 = vmul.f32 %v63, 0.5
  %v68 = vmul.f32 %v64, 0.5
  %v69 = vtanh.pop %v67
  %v70 = vtanh.pop %v68
  %v71 = vmul.f32 %v69, 0.5
  %v72 = vmul.f32 %v70, 0.5
  %v73 = vadd.f32 %v71, 0.5
  %v74 = vadd.f32 %v72, 0.5
  %v75 = vld [vmem:[%s2] sm:$0xff]
  %v76 = vmul.f32 %v73, %v65
  %v77 = vmul.f32 %v74, %v66
  %v78 = vadd.f32 %v76, %v77
  %v79 = vadd.f32 %v75, %v78
  %80 = vst [vmem:[%s2] sm:$0xff] %v79
  %v81 = vld [vmem:[%s3] sm:$0xff]
  %v82 = vadd.f32 %v73, %v65
  %v83 = vadd.f32 %v74, %v66
  %v84 = vadd.f32 %v82, %v83
  %v85 = vadd.f32 %v81, %v84
  %86 = vst [vmem:[%s3] sm:$0xff] %v85
  // Predicated region
  $region14: #{iou_loss.1} parent=0 // pred_check
    _
  $region15: #{iou_loss.1} parent=0 // pred_check_branch
    %88 = sbr.rel (0) target = $region17
  $region16: #{iou_loss.1} parent=0 // pred_region
    _
  $region17: #{iou_loss.1} parent=0 // pred_fallthru
    _
  // Predicated region
  $region18: #{iou_loss.1} parent=0 // pred_check
    _
  $region19: #{iou_loss.1} parent=0 // pred_check_branch
    %90 = sbr.rel (0) target = $region21
  $region20: #{iou_loss.1} parent=0 // pred_region
    _
  $region21: #{iou_loss.1} parent=0 // pred_fallthru
    _
  // Predicated region
  $region22: #{iou_loss.1} parent=0 // pred_check
    _
  $region23: #{iou_loss.1} parent=0 // pred_check_branch
    %92 = sbr.rel (0) target = $region25
  $region24: #{iou_loss.1} parent=0 // pred_region
    _
  $region25: #{iou_loss.1} parent=0 // pred_fallthru
    _
  // Predicated region
  $region26: #{iou_loss.1} parent=0 // pred_check
    _
  $region27: #{iou_loss.1} parent=0 // pred_check_branch
    %94 = sbr.rel (0) target = $region29
  $region28: #{iou_loss.1} parent=0 // pred_region
    _
  $region29: #{iou_loss.1} parent=0 // pred_fallthru
    _

</llo_original>
